<compile_context>
chip_gen: v6e
topology: v6e:2x2x1
jax: 0.10.0
libtpu: 0.0.40
codegen_flags: <defaults>
</compile_context>

<pallas_src>
import jax
import jax.numpy as jnp
from jax.experimental import pallas as pl
from jax.experimental.pallas import tpu as pltpu

D_IN, D_H1, D_H2, D_OUT = 28 * 28, 256, 128, 10
D_OUT_PAD = 128  # lane-dense padded output width (real logits are [:, :10])


def _mlp_kernel(x_ref, w1_ref, b1_ref, w2_ref, b2_ref, w3_ref, b3_ref, o_ref):
    # x_ref: [TB, 784] bf16; w*: bf16 [in, out]; b*: f32 [1, out]; o_ref: [TB, 128] f32.
    x = x_ref[...]

    h1 = jnp.dot(x, w1_ref[...], preferred_element_type=jnp.float32)
    h1 = jnp.maximum(h1 + b1_ref[...], 0.0).astype(jnp.bfloat16)   # ReLU, back to bf16 for MXU

    h2 = jnp.dot(h1, w2_ref[...], preferred_element_type=jnp.float32)
    h2 = jnp.maximum(h2 + b2_ref[...], 0.0).astype(jnp.bfloat16)   # ReLU

    out = jnp.dot(h2, w3_ref[...], preferred_element_type=jnp.float32)
    o_ref[...] = (out + b3_ref[...]).astype(o_ref.dtype)


def mnist_classifier_forward(x, params, *, tb=256):
    """x: [B, 1, 28, 28] float32 (NCHW, torch convention). Returns logits [B, 10] f32."""
    w1, b1, w2, b2, w3, b3 = params
    B = x.shape[0]

    # nn.Flatten(): [B, 1, 28, 28] -> [B, 784]; cast operands to bf16 for the MXU.
    x2d = x.reshape(B, D_IN).astype(jnp.bfloat16)

    # Pick a batch tile: up to `tb`, at least 8 (sublane multiple); pad B to a tile multiple.
    b8 = max(8, pl.cdiv(B, 8) * 8)
    TB = min(tb, b8)
    B_pad = pl.cdiv(b8, TB) * TB
    if B_pad != B:
        x2d = jnp.pad(x2d, ((0, B_pad - B), (0, 0)))

    # Lane-dense final layer: zero-pad 10 -> 128 output columns (unmasked vst).
    w3p = jnp.zeros((D_H2, D_OUT_PAD), w3.dtype).at[:, :D_OUT].set(w3)
    b3p = jnp.zeros((1, D_OUT_PAD), b3.dtype).at[:, :D_OUT].set(b3)

    # Weights/biases: same block every grid step -> stay resident in VMEM.
    resident = lambda shape: pl.BlockSpec(shape, lambda i: (0, 0))

    out_pad = pl.pallas_call(
        _mlp_kernel,
        out_shape=jax.ShapeDtypeStruct((B_pad, D_OUT_PAD), jnp.float32),
        grid=(B_pad // TB,),
        in_specs=[
            pl.BlockSpec((TB, D_IN), lambda i: (i, 0)),   # x tile, pipelined over batch
            resident(w1.shape), resident(b1.shape),
            resident(w2.shape), resident(b2.shape),
            resident(w3p.shape), resident(b3p.shape),
        ],
        out_specs=pl.BlockSpec((TB, D_OUT_PAD), lambda i: (i, 0)),
        compiler_params=pltpu.CompilerParams(
            dimension_semantics=("parallel",),   # shard batch axis across TCs on v7x
            vmem_limit_bytes=32 << 20,
        ),
    )(x2d, w1, b1, w2, b2, w3p, b3p)

    # Drop batch padding and the zero-padded logit columns.
    return out_pad[:B, :D_OUT]


def init_params(key):
    """Deterministic init matching torch nn.Linear shapes.

    Weights are stored [in, out] (transpose of torch's [out, in]) in bf16 so
    the kernel does x @ W directly on the MXU; biases stay f32.
    """
    dims = [(D_IN, D_H1), (D_H1, D_H2), (D_H2, D_OUT)]
    params = []
    for fan_in, fan_out in dims:
        key, kw, kb = jax.random.split(key, 3)
        bound = 1.0 / jnp.sqrt(fan_in)
        w = jax.random.uniform(kw, (fan_in, fan_out), jnp.float32, -bound, bound)
        b = jax.random.uniform(kb, (1, fan_out), jnp.float32, -bound, bound)
        params += [w.astype(jnp.bfloat16), b]
    return tuple(params)


if __name__ == "__main__":
    key = jax.random.PRNGKey(0)
    key, kx = jax.random.split(key)

    B = 8
    x = jax.random.normal(kx, (B, 1, 28, 28), dtype=jnp.float32)  # NCHW like torch
    params = init_params(key)

    logits = mnist_classifier_forward(x, params)
    logits = jax.block_until_ready(logits)

    # Pure-JAX reference of the same (bf16-operand, f32-accumulate) forward pass.
    w1, b1, w2, b2, w3, b3 = params
    xf = x.reshape(B, D_IN).astype(jnp.bfloat16)
    h1 = jnp.maximum(jnp.dot(xf, w1, preferred_element_type=jnp.float32) + b1, 0.0)
    h1 = h1.astype(jnp.bfloat16)
    h2 = jnp.maximum(jnp.dot(h1, w2, preferred_element_type=jnp.float32) + b2, 0.0)
    h2 = h2.astype(jnp.bfloat16)
    ref = jnp.dot(h2, w3, preferred_element_type=jnp.float32) + b3

    assert logits.shape == (B, D_OUT)
    assert jnp.allclose(logits, ref, atol=2e-2, rtol=2e-2)

    print("KERNEL_OK")
</pallas_src>

<mosaic_0001>
module attributes {stable_mosaic.version = 11 : i64} {
  func.func @_mlp_kernel(%arg0: i32, %arg1: memref<8x784xbf16, #tpu.memory_space<vmem>>, %arg2: memref<784x256xbf16, #tpu.memory_space<vmem>>, %arg3: memref<1x256xf32, #tpu.memory_space<vmem>>, %arg4: memref<256x128xbf16, #tpu.memory_space<vmem>>, %arg5: memref<1x128xf32, #tpu.memory_space<vmem>>, %arg6: memref<128x128xbf16, #tpu.memory_space<vmem>>, %arg7: memref<1x128xf32, #tpu.memory_space<vmem>>, %arg8: memref<8x128xf32, #tpu.memory_space<vmem>>) attributes {dimension_semantics = [#tpu.dimension_semantics<parallel>], iteration_bounds = array<i64: 1>, scalar_prefetch = 0 : i64, scratch_operands = 0 : i64, tpu.core_type = #tpu.core_type<tc>, window_params = [{transform_indices = @transform_0, window_bounds = array<i64: 8, 784>}, {pipeline_mode = #tpu.pipeline_mode<synchronous>, transform_indices = @transform_1, window_bounds = array<i64: 784, 256>}, {pipeline_mode = #tpu.pipeline_mode<synchronous>, transform_indices = @transform_2, window_bounds = array<i64: 1, 256>}, {pipeline_mode = #tpu.pipeline_mode<synchronous>, transform_indices = @transform_3, window_bounds = array<i64: 256, 128>}, {pipeline_mode = #tpu.pipeline_mode<synchronous>, transform_indices = @transform_4, window_bounds = array<i64: 1, 128>}, {pipeline_mode = #tpu.pipeline_mode<synchronous>, transform_indices = @transform_5, window_bounds = array<i64: 128, 128>}, {pipeline_mode = #tpu.pipeline_mode<synchronous>, transform_indices = @transform_6, window_bounds = array<i64: 1, 128>}, {transform_indices = @transform_7, window_bounds = array<i64: 8, 128>}]} {
    %c0 = arith.constant 0 : index
    %c0_0 = arith.constant 0 : index
    %0 = vector.load %arg1[%c0, %c0_0] : memref<8x784xbf16, #tpu.memory_space<vmem>>, vector<8x784xbf16>
    %c0_1 = arith.constant 0 : index
    %c0_2 = arith.constant 0 : index
    %1 = vector.load %arg2[%c0_1, %c0_2] : memref<784x256xbf16, #tpu.memory_space<vmem>>, vector<784x256xbf16>
    %cst = arith.constant dense<0.000000e+00> : vector<8x256xf32>
    %2 = tpu.matmul %0, %1, %cst {dimension_numbers = #tpu.dot_dimension_numbers<[1], [0], [0], [1], [0, 0, 1, 1], [], []>} : vector<8x784xbf16>, vector<784x256xbf16>, vector<8x256xf32> -> vector<8x256xf32>
    %c0_3 = arith.constant 0 : index
    %c0_4 = arith.constant 0 : index
    %3 = vector.load %arg3[%c0_3, %c0_4] : memref<1x256xf32, #tpu.memory_space<vmem>>, vector<1x256xf32>
    %4 = vector.broadcast %3 : vector<1x256xf32> to vector<8x256xf32>
    %5 = arith.addf %2, %4 : vector<8x256xf32>
    %cst_5 = arith.constant 0.000000e+00 : f32
    %6 = vector.broadcast %cst_5 : f32 to vector<8x256xf32>
    %7 = arith.maximumf %5, %6 : vector<8x256xf32>
    %8 = arith.truncf %7 : vector<8x256xf32> to vector<8x256xbf16>
    %c0_6 = arith.constant 0 : index
    %c0_7 = arith.constant 0 : index
    %9 = vector.load %arg4[%c0_6, %c0_7] : memref<256x128xbf16, #tpu.memory_space<vmem>>, vector<256x128xbf16>
    %cst_8 = arith.constant dense<0.000000e+00> : vector<8x128xf32>
    %10 = tpu.matmul %8, %9, %cst_8 {dimension_numbers = #tpu.dot_dimension_numbers<[1], [0], [0], [1], [0, 0, 1, 1], [], []>} : vector<8x256xbf16>, vector<256x128xbf16>, vector<8x128xf32> -> vector<8x128xf32>
    %c0_9 = arith.constant 0 : index
    %c0_10 = arith.constant 0 : index
    %11 = vector.load %arg5[%c0_9, %c0_10] : memref<1x128xf32, #tpu.memory_space<vmem>>, vector<1x128xf32>
    %12 = vector.broadcast %11 : vector<1x128xf32> to vector<8x128xf32>
    %13 = arith.addf %10, %12 : vector<8x128xf32>
    %cst_11 = arith.constant 0.000000e+00 : f32
    %14 = vector.broadcast %cst_11 : f32 to vector<8x128xf32>
    %15 = arith.maximumf %13, %14 : vector<8x128xf32>
    %16 = arith.truncf %15 : vector<8x128xf32> to vector<8x128xbf16>
    %c0_12 = arith.constant 0 : index
    %c0_13 = arith.constant 0 : index
    %17 = vector.load %arg6[%c0_12, %c0_13] : memref<128x128xbf16, #tpu.memory_space<vmem>>, vector<128x128xbf16>
    %cst_14 = arith.constant dense<0.000000e+00> : vector<8x128xf32>
    %18 = tpu.matmul %16, %17, %cst_14 {dimension_numbers = #tpu.dot_dimension_numbers<[1], [0], [0], [1], [0, 0, 1, 1], [], []>} : vector<8x128xbf16>, vector<128x128xbf16>, vector<8x128xf32> -> vector<8x128xf32>
    %c0_15 = arith.constant 0 : index
    %c0_16 = arith.constant 0 : index
    %19 = vector.load %arg7[%c0_15, %c0_16] : memref<1x128xf32, #tpu.memory_space<vmem>>, vector<1x128xf32>
    %20 = vector.broadcast %19 : vector<1x128xf32> to vector<8x128xf32>
    %21 = arith.addf %18, %20 : vector<8x128xf32>
    %c0_17 = arith.constant 0 : index
    %c0_18 = arith.constant 0 : index
    %22 = vector.load %arg8[%c0_17, %c0_18] : memref<8x128xf32, #tpu.memory_space<vmem>>, vector<8x128xf32>
    tpu.vector_store %arg8[%c0_17, %c0_18], %21 {strides = array<i32>} : memref<8x128xf32, #tpu.memory_space<vmem>>, vector<8x128xf32>,
    return
  }
  func.func @transform_0(%arg0: i32) -> (i32, i32) {
    %c0_i32 = arith.constant 0 : i32
    %c0_i32_0 = arith.constant 0 : i32
    return %arg0, %c0_i32 : i32, i32
  }
  func.func @transform_1(%arg0: i32) -> (i32, i32) {
    %c0_i32 = arith.constant 0 : i32
    %c0_i32_0 = arith.constant 0 : i32
    %c0_i32_1 = arith.constant 0 : i32
    return %c0_i32, %c0_i32_0 : i32, i32
  }
  func.func @transform_2(%arg0: i32) -> (i32, i32) {
    %c0_i32 = arith.constant 0 : i32
    %c0_i32_0 = arith.constant 0 : i32
    %c0_i32_1 = arith.constant 0 : i32
    return %c0_i32, %c0_i32_0 : i32, i32
  }
  func.func @transform_3(%arg0: i32) -> (i32, i32) {
    %c0_i32 = arith.constant 0 : i32
    %c0_i32_0 = arith.constant 0 : i32
    %c0_i32_1 = arith.constant 0 : i32
    return %c0_i32, %c0_i32_0 : i32, i32
  }
  func.func @transform_4(%arg0: i32) -> (i32, i32) {
    %c0_i32 = arith.constant 0 : i32
    %c0_i32_0 = arith.constant 0 : i32
    %c0_i32_1 = arith.constant 0 : i32
    return %c0_i32, %c0_i32_0 : i32, i32
  }
  func.func @transform_5(%arg0: i32) -> (i32, i32) {
    %c0_i32 = arith.constant 0 : i32
    %c0_i32_0 = arith.constant 0 : i32
    %c0_i32_1 = arith.constant 0 : i32
    return %c0_i32, %c0_i32_0 : i32, i32
  }
  func.func @transform_6(%arg0: i32) -> (i32, i32) {
    %c0_i32 = arith.constant 0 : i32
    %c0_i32_0 = arith.constant 0 : i32
    %c0_i32_1 = arith.constant 0 : i32
    return %c0_i32, %c0_i32_0 : i32, i32
  }
  func.func @transform_7(%arg0: i32) -> (i32, i32) {
    %c0_i32 = arith.constant 0 : i32
    %c0_i32_0 = arith.constant 0 : i32
    return %arg0, %c0_i32 : i32, i32
  }
}

</mosaic_0001>

<llo_original>
// kernel: tpu_custom_call.1
$region0: #{tpu_custom_call.1}
  #allocation0 [shape = 'u32[]', space=smem, size = 0x4, offset = 0x4, fixed_abs, tag = 'smem constant byte address 0x4 - core index']
  #allocation1 [shape = 'u32[144,128]{1,0:T(1,128)}', space=vmem, size = 0x12000, scoped, tag = 'internal scratch']
  %s0 = inlined_call_operand.hbm [shape: bf16[8,784], index: 0, kind: input, shape index: {}]
  %s1 = inlined_call_operand.hbm [shape: bf16[784,256], index: 1, kind: input, shape index: {}]
  %s2 = inlined_call_operand.vmem [shape: f32[1,256], index: 2, kind: input, shape index: {}]
  %s3 = inlined_call_operand.hbm [shape: bf16[256,128], index: 3, kind: input, shape index: {}]
  %s4 = inlined_call_operand.vmem [shape: f32[1,128], index: 4, kind: input, shape index: {}]
  %s5 = inlined_call_operand.hbm [shape: bf16[128,128], index: 5, kind: input, shape index: {}]
  %s6 = inlined_call_operand.vmem [shape: f32[1,128], index: 6, kind: input, shape index: {}]
  %s7 = inlined_call_operand.hbm [shape: f32[8,128], index: 7, kind: output, shape index: {}]
  %s8 = sld [smem:[#allocation0]]
  $region54: #{tpu_custom_call.1} parent=0
    _
  %s10 = ssub.s32 1, %s8
  %s11 = scalar_select 0, %s10, %s8
  $region1: #{tpu_custom_call.1} parent=0
    #allocation2 [shape = 'u8[14336]{0}', space=vmem, size = 0x3800, scoped, tag = 'input window, operand 0, single buffered']
    #allocation3 [shape = 's32[1]{0}', space=sflag, size = 0x4, scoped, tag = 'scoped memory for tpu_custom_call.1']
    #allocation4 [shape = 's32[1]{0}', space=sflag, size = 0x4, scoped, tag = 'scoped memory for tpu_custom_call.1']
    #allocation5 [shape = 'u8[401408]{0}', space=vmem, size = 0x62000, scoped, tag = 'input window, operand 1, single buffered']
    #allocation6 [shape = 's32[1]{0}', space=sflag, size = 0x4, scoped, tag = 'scoped memory for tpu_custom_call.1']
    #allocation7 [shape = 'u8[65536]{0}', space=vmem, size = 0x10000, scoped, tag = 'input window, operand 3, single buffered']
    #allocation8 [shape = 'u8[32768]{0}', space=vmem, size = 0x8000, scoped, tag = 'input window, operand 5, single buffered']
    #allocation9 [shape = 's32[1]{0}', space=sflag, size = 0x4, scoped, tag = 'scoped memory for tpu_custom_call.1']
    #allocation10 [shape = 'u8[4096]{0}', space=vmem, size = 0x1000, scoped, tag = 'output window, operand 0, single buffered']
    %12 = vsyncpa [#allocation3], 0
    %13 = vsyncpa [#allocation6], 0
    %14 = vsyncpa [#allocation9], 0
    %15 = vsyncpa [#allocation4], 0
    // Predicated region
    $region2: #{tpu_custom_call.1} parent=1 // pred_check
      _
    $region3: #{tpu_custom_call.1} parent=1 // pred_check_branch
      %17 = sbr.rel (0) target = $region5
    $region4: #{tpu_custom_call.1} parent=1 // pred_region
      %s19 = ssub.s32 448, 448
      %20 = vsyncadd [#allocation3], %s19
      %s22 = sshll.u32 [#allocation2], 4
      %s23 = int_to_ptr.vmem [resolvable:$true] %s22
      %25 = dma.hbm_to_vmem [thread:$0]  %s0, 448, %s23, [#allocation3]
    $region5: #{tpu_custom_call.1} parent=1 // pred_fallthru
      _
    // Predicated region
    $region6: #{tpu_custom_call.1} parent=1 // pred_check
      _
    $region7: #{tpu_custom_call.1} parent=1 // pred_check_branch
      %27 = sbr.rel (0) target = $region9
    $region8: #{tpu_custom_call.1} parent=1 // pred_region
      %s29 = ssub.s32 12544, 12544
      %30 = vsyncadd [#allocation6], %s29
      %s31 = sshll.u32 [#allocation5], 4
      %s32 = int_to_ptr.vmem [resolvable:$true] %s31
      %37 = dma.hbm_to_vmem [thread:$0]  %s1, 12544, %s32, [#allocation6], 128, 128, 8
    $region9: #{tpu_custom_call.1} parent=1 // pred_fallthru
      _
    // Predicated region
    $region10: #{tpu_custom_call.1} parent=1 // pred_check
      _
    $region11: #{tpu_custom_call.1} parent=1 // pred_check_branch
      %39 = sbr.rel (0) target = $region13
    $region12: #{tpu_custom_call.1} parent=1 // pred_region
      _
    $region13: #{tpu_custom_call.1} parent=1 // pred_fallthru
      _
    // Predicated region
    $region14: #{tpu_custom_call.1} parent=1 // pred_check
      _
    $region15: #{tpu_custom_call.1} parent=1 // pred_check_branch
      %41 = sbr.rel (0) target = $region17
    $region16: #{tpu_custom_call.1} parent=1 // pred_region
      %s43 = ssub.s32 2048, 2048
      %44 = vsyncadd [#allocation6], %s43
      %s45 = sshll.u32 [#allocation7], 4
      %s46 = int_to_ptr.vmem [resolvable:$true] %s45
      %51 = dma.hbm_to_vmem [thread:$0]  %s3, 2048, %s46, [#allocation6], 64, 64, 4
    $region17: #{tpu_custom_call.1} parent=1 // pred_fallthru
      _
    // Predicated region
    $region18: #{tpu_custom_call.1} parent=1 // pred_check
      _
    $region19: #{tpu_custom_call.1} parent=1 // pred_check_branch
      %53 = sbr.rel (0) target = $region21
    $region20: #{tpu_custom_call.1} parent=1 // pred_region
      _
    $region21: #{tpu_custom_call.1} parent=1 // pred_fallthru
      _
    // Predicated region
    $region22: #{tpu_custom_call.1} parent=1 // pred_check
      _
    $region23: #{tpu_custom_call.1} parent=1 // pred_check_branch
      %55 = sbr.rel (0) target = $region25
    $region24: #{tpu_custom_call.1} parent=1 // pred_region
      %s57 = ssub.s32 1024, 1024
      %58 = vsyncadd [#allocation9], %s57
      %s59 = sshll.u32 [#allocation8], 4
      %s60 = int_to_ptr.vmem [resolvable:$true] %s59
      %65 = dma.hbm_to_vmem [thread:$0]  %s5, 1024, %s60, [#allocation9], 64, 64, 4
    $region25: #{tpu_custom_call.1} parent=1 // pred_fallthru
      _
    // Predicated region
    $region26: #{tpu_custom_call.1} parent=1 // pred_check
      _
    $region27: #{tpu_custom_call.1} parent=1 // pred_check_branch
      %67 = sbr.rel (0) target = $region29
    $region28: #{tpu_custom_call.1} parent=1 // pred_region
      _
    $region29: #{tpu_custom_call.1} parent=1 // pred_fallthru
      _
    // Predicated region
    $region30: #{tpu_custom_call.1} parent=1 // pred_check
      _
    $region31: #{tpu_custom_call.1} parent=1 // pred_check_branch
      %69 = sbr.rel (0) target = $region33
    $region32: #{tpu_custom_call.1} parent=1 // pred_region
      %70 = dma.done [#allocation3], 448
    $region33: #{tpu_custom_call.1} parent=1 // pred_fallthru
      _
    // Predicated region
    $region34: #{tpu_custom_call.1} parent=1 // pred_check
      _
    $region35: #{tpu_custom_call.1} parent=1 // pred_check_branch
      %72 = sbr.rel (0) target = $region37
    $region36: #{tpu_custom_call.1} parent=1 // pred_region
      %73 = dma.done [#allocation6], 12544
    $region37: #{tpu_custom_call.1} parent=1 // pred_fallthru
      _
    // Predicated region
    $region38: #{tpu_custom_call.1} parent=1 // pred_check
      _
    $region39: #{tpu_custom_call.1} parent=1 // pred_check_branch
      %75 = sbr.rel (0) target = $region41
    $region40: #{tpu_custom_call.1} parent=1 // pred_region
      %76 = dma.done [#allocation6], 2048
    $region41: #{tpu_custom_call.1} parent=1 // pred_fallthru
      _
    // Predicated region
    $region42: #{tpu_custom_call.1} parent=1 // pred_check
      _
    $region43: #{tpu_custom_call.1} parent=1 // pred_check_branch
      %78 = sbr.rel (0) target = $region45
    $region44: #{tpu_custom_call.1} parent=1 // pred_region
      %79 = dma.done [#allocation9], 1024
    $region45: #{tpu_custom_call.1} parent=1 // pred_fallthru
      _
    %v81 = vld [vmem:[#allocation2] sm:$0xff]
    %v82 = vld [vmem:[#allocation2 + $0x8] sm:$0xff]
    %v83 = vld [vmem:[#allocation2 + $0x10] sm:$0xff]
    %v84 = vld [vmem:[#allocation2 + $0x18] sm:$0xf]
    %v85 = vld [vmem:[#allocation5] sm:$0xff]
    %v86 = vld [vmem:[#allocation5 + $0x8] sm:$0xff]
    %v87 = vld [vmem:[#allocation5 + $0x10] sm:$0xff]
    %v88 = vld [vmem:[#allocation5 + $0x18] sm:$0xff]
    %v89 = vld [vmem:[#allocation5 + $0x20] sm:$0xff]
    %v90 = vld [vmem:[#allocation5 + $0x28] sm:$0xff]
    %v91 = vld [vmem:[#allocation5 + $0x30] sm:$0xff]
    %v92 = vld [vmem:[#allocation5 + $0x38] sm:$0xff]
    %v93 = vld [vmem:[#allocation5 + $0x40] sm:$0xff]
    %v94 = vld [vmem:[#allocation5 + $0x48] sm:$0xff]
    %v95 = vld [vmem:[#allocation5 + $0x50] sm:$0xff]
    %v96 = vld [vmem:[#allocation5 + $0x58] sm:$0xff]
    %v97 = vld [vmem:[#allocation5 + $0x60] sm:$0xff]
    %v98 = vld [vmem:[#allocation5 + $0x68] sm:$0xff]
    %v99 = vld [vmem:[#allocation5 + $0x70] sm:$0xff]
    %v100 = vld [vmem:[#allocation5 + $0x78] sm:$0xff]
    %v101 = vld [vmem:[#allocation5 + $0x80] sm:$0xff]
    %v102 = vld [vmem:[#allocation5 + $0x88] sm:$0xff]
    %v103 = vld [vmem:[#allocation5 + $0x90] sm:$0xff]
    %v104 = vld [vmem:[#allocation5 + $0x98] sm:$0xff]
    %v105 = vld [vmem:[#allocation5 + $0xa0] sm:$0xff]
    %v106 = vld [vmem:[#allocation5 + $0xa8] sm:$0xff]
    %v107 = vld [vmem:[#allocation5 + $0xb0] sm:$0xff]
    %v108 = vld [vmem:[#allocation5 + $0xb8] sm:$0xff]
    %v109 = vld [vmem:[#allocation5 + $0xc0] sm:$0xff]
    %v110 = vld [vmem:[#allocation5 + $0xc8] sm:$0xff]
    %v111 = vld [vmem:[#allocation5 + $0xd0] sm:$0xff]
    %v112 = vld [vmem:[#allocation5 + $0xd8] sm:$0xff]
    %v113 = vld [vmem:[#allocation5 + $0xe0] sm:$0xff]
    %v114 = vld [vmem:[#allocation5 + $0xe8] sm:$0xff]
    %v115 = vld [vmem:[#allocation5 + $0xf0] sm:$0xff]
    %v116 = vld [vmem:[#allocation5 + $0xf8] sm:$0xff]
    %v117 = vld [vmem:[#allocation5 + $0x100] sm:$0xff]
    %v118 = vld [vmem:[#allocation5 + $0x108] sm:$0xff]
    %v119 = vld [vmem:[#allocation5 + $0x110] sm:$0xff]
    %v120 = vld [vmem:[#allocation5 + $0x118] sm:$0xff]
    %v121 = vld [vmem:[#allocation5 + $0x120] sm:$0xff]
    %v122 = vld [vmem:[#allocation5 + $0x128] sm:$0xff]
    %v123 = vld [vmem:[#allocation5 + $0x130] sm:$0xff]
    %v124 = vld [vmem:[#allocation5 + $0x138] sm:$0xff]
    %v125 = vld [vmem:[#allocation5 + $0x140] sm:$0xff]
    %v126 = vld [vmem:[#allocation5 + $0x148] sm:$0xff]
    %v127 = vld [vmem:[#allocation5 + $0x150] sm:$0xff]
    %v128 = vld [vmem:[#allocation5 + $0x158] sm:$0xff]
    %v129 = vld [vmem:[#allocation5 + $0x160] sm:$0xff]
    %v130 = vld [vmem:[#allocation5 + $0x168] sm:$0xff]
    %v131 = vld [vmem:[#allocation5 + $0x170] sm:$0xff]
    %v132 = vld [vmem:[#allocation5 + $0x178] sm:$0xff]
    %v133 = vld [vmem:[#allocation5 + $0x180] sm:$0xff]
    %v134 = vld [vmem:[#allocation5 + $0x188] sm:$0xff]
    %v135 = vld [vmem:[#allocation5 + $0x190] sm:$0xff]
    %v136 = vld [vmem:[#allocation5 + $0x198] sm:$0xff]
    %v137 = vld [vmem:[#allocation5 + $0x1a0] sm:$0xff]
    %v138 = vld [vmem:[#allocation5 + $0x1a8] sm:$0xff]
    %v139 = vld [vmem:[#allocation5 + $0x1b0] sm:$0xff]
    %v140 = vld [vmem:[#allocation5 + $0x1b8] sm:$0xff]
    %v141 = vld [vmem:[#allocation5 + $0x1c0] sm:$0xff]
    %v142 = vld [vmem:[#allocation5 + $0x1c8] sm:$0xff]
    %v143 = vld [vmem:[#allocation5 + $0x1d0] sm:$0xff]
    %v144 = vld [vmem:[#allocation5 + $0x1d8] sm:$0xff]
    %v145 = vld [vmem:[#allocation5 + $0x1e0] sm:$0xff]
    %v146 = vld [vmem:[#allocation5 + $0x1e8] sm:$0xff]
    %v147 = vld [vmem:[#allocation5 + $0x1f0] sm:$0xff]
    %v148 = vld [vmem:[#allocation5 + $0x1f8] sm:$0xff]
    %v149 = vld [vmem:[#allocation5 + $0x200] sm:$0xff]
    %v150 = vld [vmem:[#allocation5 + $0x208] sm:$0xff]
    %v151 = vld [vmem:[#allocation5 + $0x210] sm:$0xff]
    %v152 = vld [vmem:[#allocation5 + $0x218] sm:$0xff]
    %v153 = vld [vmem:[#allocation5 + $0x220] sm:$0xff]
    %v154 = vld [vmem:[#allocation5 + $0x228] sm:$0xff]
    %v155 = vld [vmem:[#allocation5 + $0x230] sm:$0xff]
    %v156 = vld [vmem:[#allocation5 + $0x238] sm:$0xff]
    %v157 = vld [vmem:[#allocation5 + $0x240] sm:$0xff]
    %v158 = vld [vmem:[#allocation5 + $0x248] sm:$0xff]
    %v159 = vld [vmem:[#allocation5 + $0x250] sm:$0xff]
    %v160 = vld [vmem:[#allocation5 + $0x258] sm:$0xff]
    %v161 = vld [vmem:[#allocation5 + $0x260] sm:$0xff]
    %v162 = vld [vmem:[#allocation5 + $0x268] sm:$0xff]
    %v163 = vld [vmem:[#allocation5 + $0x270] sm:$0xff]
    %v164 = vld [vmem:[#allocation5 + $0x278] sm:$0xff]
    %v165 = vld [vmem:[#allocation5 + $0x280] sm:$0xff]
    %v166 = vld [vmem:[#allocation5 + $0x288] sm:$0xff]
    %v167 = vld [vmem:[#allocation5 + $0x290] sm:$0xff]
    %v168 = vld [vmem:[#allocation5 + $0x298] sm:$0xff]
    %v169 = vld [vmem:[#allocation5 + $0x2a0] sm:$0xff]
    %v170 = vld [vmem:[#allocation5 + $0x2a8] sm:$0xff]
    %v171 = vld [vmem:[#allocation5 + $0x2b0] sm:$0xff]
    %v172 = vld [vmem:[#allocation5 + $0x2b8] sm:$0xff]
    %v173 = vld [vmem:[#allocation5 + $0x2c0] sm:$0xff]
    %v174 = vld [vmem:[#allocation5 + $0x2c8] sm:$0xff]
    %v175 = vld [vmem:[#allocation5 + $0x2d0] sm:$0xff]
    %v176 = vld [vmem:[#allocation5 + $0x2d8] sm:$0xff]
    %v177 = vld [vmem:[#allocation5 + $0x2e0] sm:$0xff]
    %v178 = vld [vmem:[#allocation5 + $0x2e8] sm:$0xff]
    %v179 = vld [vmem:[#allocation5 + $0x2f0] sm:$0xff]
    %v180 = vld [vmem:[#allocation5 + $0x2f8] sm:$0xff]
    %v181 = vld [vmem:[#allocation5 + $0x300] sm:$0xff]
    %v182 = vld [vmem:[#allocation5 + $0x308] sm:$0xff]
    %v183 = vld [vmem:[%s2] sm:$0x3]
    %v185 = vlaneseq
    %v186 = vshrl.u32 %v185, 7
    %v187 = vsub.s32 0, %v186
    %v188 = vrot.slane %v183, %v187
    %v189 = vlaneseq
    %v190 = vshrl.u32 %v189, 7
    %v191 = vsub.s32 1, %v190
    %v192 = vrot.slane %v183, %v191
    %v199 = vunpack.c.l.b16 %v81
    %v200 = vunpack.c.h.b16 %v81
    %v201 = vunpack.c.l.b16 %v82
    %v202 = vunpack.c.h.b16 %v82
    %v203 = vunpack.c.l.b16 %v83
    %v204 = vunpack.c.h.b16 %v83
    %v205 = vunpack.c.l.b16 %v84
    %v206 = vpack.c.b16 %v199, %v199
    %v207 = vpack.c.b16 %v200, %v200
    %v208 = vpack.c.b16 %v201, %v201
    %v209 = vpack.c.b16 %v202, %v202
    %v210 = vpack.c.b16 %v203, %v203
    %v211 = vpack.c.b16 %v204, %v204
    %v212 = vpack.c.b16 %v205, %v205
    %v317 = vunpack.c.l.b16 %v85
    %v318 = vunpack.c.h.b16 %v85
    %v319 = vunpack.c.l.b16 %v86
    %v320 = vunpack.c.h.b16 %v86
    %v321 = vunpack.c.l.b16 %v87
    %v322 = vunpack.c.h.b16 %v87
    %v323 = vunpack.c.l.b16 %v88
    %v324 = vunpack.c.h.b16 %v88
    %v325 = vunpack.c.l.b16 %v89
    %v326 = vunpack.c.h.b16 %v89
    %v327 = vunpack.c.l.b16 %v90
    %v328 = vunpack.c.h.b16 %v90
    %v329 = vunpack.c.l.b16 %v91
    %v330 = vunpack.c.h.b16 %v91
    %v331 = vunpack.c.l.b16 %v92
    %v332 = vunpack.c.h.b16 %v92
    %v333 = vunpack.c.l.b16 %v93
    %v334 = vunpack.c.h.b16 %v93
    %v335 = vunpack.c.l.b16 %v94
    %v336 = vunpack.c.h.b16 %v94
    %v337 = vunpack.c.l.b16 %v95
    %v338 = vunpack.c.h.b16 %v95
    %v339 = vunpack.c.l.b16 %v96
    %v340 = vunpack.c.h.b16 %v96
    %v341 = vunpack.c.l.b16 %v97
    %v342 = vunpack.c.h.b16 %v97
    %v343 = vunpack.c.l.b16 %v98
    %v344 = vunpack.c.h.b16 %v98
    %v345 = vunpack.c.l.b16 %v99
    %v346 = vunpack.c.h.b16 %v99
    %v347 = vunpack.c.l.b16 %v100
    %v348 = vunpack.c.h.b16 %v100
    %v349 = vunpack.c.l.b16 %v101
    %v350 = vunpack.c.h.b16 %v101
    %v351 = vunpack.c.l.b16 %v102
    %v352 = vunpack.c.h.b16 %v102
    %v353 = vunpack.c.l.b16 %v103
    %v354 = vunpack.c.h.b16 %v103
    %v355 = vunpack.c.l.b16 %v104
    %v356 = vunpack.c.h.b16 %v104
    %v357 = vunpack.c.l.b16 %v105
    %v358 = vunpack.c.h.b16 %v105
    %v359 = vunpack.c.l.b16 %v106
    %v360 = vunpack.c.h.b16 %v106
    %v361 = vunpack.c.l.b16 %v107
    %v362 = vunpack.c.h.b16 %v107
    %v363 = vunpack.c.l.b16 %v108
    %v364 = vunpack.c.h.b16 %v108
    %v365 = vunpack.c.l.b16 %v109
    %v366 = vunpack.c.h.b16 %v109
    %v367 = vunpack.c.l.b16 %v110
    %v368 = vunpack.c.h.b16 %v110
    %v369 = vunpack.c.l.b16 %v111
    %v370 = vunpack.c.h.b16 %v111
    %v371 = vunpack.c.l.b16 %v112
    %v372 = vunpack.c.h.b16 %v112
    %v373 = vunpack.c.l.b16 %v113
    %v374 = vunpack.c.h.b16 %v113
    %v375 = vunpack.c.l.b16 %v114
    %v376 = vunpack.c.h.b16 %v114
    %v377 = vunpack.c.l.b16 %v115
    %v378 = vunpack.c.h.b16 %v115
    %v379 = vunpack.c.l.b16 %v116
    %v380 = vunpack.c.h.b16 %v116
    %v381 = vunpack.c.l.b16 %v117
    %v382 = vunpack.c.h.b16 %v117
    %v383 = vunpack.c.l.b16 %v118
    %v384 = vunpack.c.h.b16 %v118
    %v385 = vunpack.c.l.b16 %v119
    %v386 = vunpack.c.h.b16 %v119
    %v387 = vunpack.c.l.b16 %v120
    %v388 = vunpack.c.h.b16 %v120
    %v389 = vunpack.c.l.b16 %v121
    %v390 = vunpack.c.h.b16 %v121
    %v391 = vunpack.c.l.b16 %v122
    %v392 = vunpack.c.h.b16 %v122
    %v393 = vunpack.c.l.b16 %v123
    %v394 = vunpack.c.h.b16 %v123
    %v395 = vunpack.c.l.b16 %v124
    %v396 = vunpack.c.h.b16 %v124
    %v397 = vunpack.c.l.b16 %v125
    %v398 = vunpack.c.h.b16 %v125
    %v399 = vunpack.c.l.b16 %v126
    %v400 = vunpack.c.h.b16 %v126
    %v401 = vunpack.c.l.b16 %v127
    %v402 = vunpack.c.h.b16 %v127
    %v403 = vunpack.c.l.b16 %v128
    %v404 = vunpack.c.h.b16 %v128
    %v405 = vunpack.c.l.b16 %v129
    %v406 = vunpack.c.h.b16 %v129
    %v407 = vunpack.c.l.b16 %v130
    %v408 = vunpack.c.h.b16 %v130
    %v409 = vunpack.c.l.b16 %v131
    %v410 = vunpack.c.h.b16 %v131
    %v411 = vunpack.c.l.b16 %v132
    %v412 = vunpack.c.h.b16 %v132
    %v413 = vunpack.c.l.b16 %v133
    %v414 = vunpack.c.h.b16 %v133
    %v415 = vunpack.c.l.b16 %v134
    %v416 = vunpack.c.h.b16 %v134
    %v417 = vunpack.c.l.b16 %v135
    %v418 = vunpack.c.h.b16 %v135
    %v419 = vunpack.c.l.b16 %v136
    %v420 = vunpack.c.h.b16 %v136
    %v421 = vunpack.c.l.b16 %v137
    %v422 = vunpack.c.h.b16 %v137
    %v423 = vunpack.c.l.b16 %v138
    %v424 = vunpack.c.h.b16 %v138
    %v425 = vunpack.c.l.b16 %v139
    %v426 = vunpack.c.h.b16 %v139
    %v427 = vunpack.c.l.b16 %v140
    %v428 = vunpack.c.h.b16 %v140
    %v429 = vunpack.c.l.b16 %v141
    %v430 = vunpack.c.h.b16 %v141
    %v431 = vunpack.c.l.b16 %v142
    %v432 = vunpack.c.h.b16 %v142
    %v433 = vunpack.c.l.b16 %v143
    %v434 = vunpack.c.h.b16 %v143
    %v435 = vunpack.c.l.b16 %v144
    %v436 = vunpack.c.h.b16 %v144
    %v437 = vunpack.c.l.b16 %v145
    %v438 = vunpack.c.h.b16 %v145
    %v439 = vunpack.c.l.b16 %v146
    %v440 = vunpack.c.h.b16 %v146
    %v441 = vunpack.c.l.b16 %v147
    %v442 = vunpack.c.h.b16 %v147
    %v443 = vunpack.c.l.b16 %v148
    %v444 = vunpack.c.h.b16 %v148
    %v445 = vunpack.c.l.b16 %v149
    %v446 = vunpack.c.h.b16 %v149
    %v447 = vunpack.c.l.b16 %v150
    %v448 = vunpack.c.h.b16 %v150
    %v449 = vunpack.c.l.b16 %v151
    %v450 = vunpack.c.h.b16 %v151
    %v451 = vunpack.c.l.b16 %v152
    %v452 = vunpack.c.h.b16 %v152
    %v453 = vunpack.c.l.b16 %v153
    %v454 = vunpack.c.h.b16 %v153
    %v455 = vunpack.c.l.b16 %v154
    %v456 = vunpack.c.h.b16 %v154
    %v457 = vunpack.c.l.b16 %v155
    %v458 = vunpack.c.h.b16 %v155
    %v459 = vunpack.c.l.b16 %v156
    %v460 = vunpack.c.h.b16 %v156
    %v461 = vunpack.c.l.b16 %v157
    %v462 = vunpack.c.h.b16 %v157
    %v463 = vunpack.c.l.b16 %v158
    %v464 = vunpack.c.h.b16 %v158
    %v465 = vunpack.c.l.b16 %v159
    %v466 = vunpack.c.h.b16 %v159
    %v467 = vunpack.c.l.b16 %v160
    %v468 = vunpack.c.h.b16 %v160
    %v469 = vunpack.c.l.b16 %v161
    %v470 = vunpack.c.h.b16 %v161
    %v471 = vunpack.c.l.b16 %v162
    %v472 = vunpack.c.h.b16 %v162
    %v473 = vunpack.c.l.b16 %v163
    %v474 = vunpack.c.h.b16 %v163
    %v475 = vunpack.c.l.b16 %v164
    %v476 = vunpack.c.h.b16 %v164
    %v477 = vunpack.c.l.b16 %v165
    %v478 = vunpack.c.h.b16 %v165
    %v479 = vunpack.c.l.b16 %v166
    %v480 = vunpack.c.h.b16 %v166
    %v481 = vunpack.c.l.b16 %v167
    %v482 = vunpack.c.h.b16 %v167
    %v483 = vunpack.c.l.b16 %v168
    %v484 = vunpack.c.h.b16 %v168
    %v485 = vunpack.c.l.b16 %v169
    %v486 = vunpack.c.h.b16 %v169
    %v487 = vunpack.c.l.b16 %v170
    %v488 = vunpack.c.h.b16 %v170
    %v489 = vunpack.c.l.b16 %v171
    %v490 = vunpack.c.h.b16 %v171
    %v491 = vunpack.c.l.b16 %v172
    %v492 = vunpack.c.h.b16 %v172
    %v493 = vunpack.c.l.b16 %v173
    %v494 = vunpack.c.h.b16 %v173
    %v495 = vunpack.c.l.b16 %v174
    %v496 = vunpack.c.h.b16 %v174
    %v497 = vunpack.c.l.b16 %v175
    %v498 = vunpack.c.h.b16 %v175
    %v499 = vunpack.c.l.b16 %v176
    %v500 = vunpack.c.h.b16 %v176
    %v501 = vunpack.c.l.b16 %v177
    %v502 = vunpack.c.h.b16 %v177
    %v503 = vunpack.c.l.b16 %v178
    %v504 = vunpack.c.h.b16 %v178
    %v505 = vunpack.c.l.b16 %v179
    %v506 = vunpack.c.h.b16 %v179
    %v507 = vunpack.c.l.b16 %v180
    %v508 = vunpack.c.h.b16 %v180
    %v509 = vunpack.c.l.b16 %v181
    %v510 = vunpack.c.h.b16 %v181
    %v511 = vunpack.c.l.b16 %v182
    %v512 = vunpack.c.h.b16 %v182
    %v513 = vpack.c.b16 %v319, %v317
    %v514 = vpack.c.b16 %v320, %v318
    %v515 = vpack.c.b16 %v323, %v321
    %v516 = vpack.c.b16 %v324, %v322
    %v517 = vpack.c.b16 %v327, %v325
    %v518 = vpack.c.b16 %v328, %v326
    %v519 = vpack.c.b16 %v331, %v329
    %v520 = vpack.c.b16 %v332, %v330
    %v521 = vpack.c.b16 %v335, %v333
    %v522 = vpack.c.b16 %v336, %v334
    %v523 = vpack.c.b16 %v339, %v337
    %v524 = vpack.c.b16 %v340, %v338
    %v525 = vpack.c.b16 %v343, %v341
    %v526 = vpack.c.b16 %v344, %v342
    %v527 = vpack.c.b16 %v347, %v345
    %v528 = vpack.c.b16 %v348, %v346
    %v529 = vpack.c.b16 %v351, %v349
    %v530 = vpack.c.b16 %v352, %v350
    %v531 = vpack.c.b16 %v355, %v353
    %v532 = vpack.c.b16 %v356, %v354
    %v533 = vpack.c.b16 %v359, %v357
    %v534 = vpack.c.b16 %v360, %v358
    %v535 = vpack.c.b16 %v363, %v361
    %v536 = vpack.c.b16 %v364, %v362
    %v537 = vpack.c.b16 %v367, %v365
    %v538 = vpack.c.b16 %v368, %v366
    %v539 = vpack.c.b16 %v371, %v369
    %v540 = vpack.c.b16 %v372, %v370
    %v541 = vpack.c.b16 %v375, %v373
    %v542 = vpack.c.b16 %v376, %v374
    %v543 = vpack.c.b16 %v379, %v377
    %v544 = vpack.c.b16 %v380, %v378
    %v545 = vpack.c.b16 %v383, %v381
    %v546 = vpack.c.b16 %v384, %v382
    %v547 = vpack.c.b16 %v387, %v385
    %v548 = vpack.c.b16 %v388, %v386
    %v549 = vpack.c.b16 %v391, %v389
    %v550 = vpack.c.b16 %v392, %v390
    %v551 = vpack.c.b16 %v395, %v393
    %v552 = vpack.c.b16 %v396, %v394
    %v553 = vpack.c.b16 %v399, %v397
    %v554 = vpack.c.b16 %v400, %v398
    %v555 = vpack.c.b16 %v403, %v401
    %v556 = vpack.c.b16 %v404, %v402
    %v557 = vpack.c.b16 %v407, %v405
    %v558 = vpack.c.b16 %v408, %v406
    %v559 = vpack.c.b16 %v411, %v409
    %v560 = vpack.c.b16 %v412, %v410
    %v561 = vpack.c.b16 %v415, %v413
    %v562 = vpack.c.b16 %v416, %v414
    %v563 = vpack.c.b16 %v419, %v417
    %v564 = vpack.c.b16 %v420, %v418
    %v565 = vpack.c.b16 %v423, %v421
    %v566 = vpack.c.b16 %v424, %v422
    %v567 = vpack.c.b16 %v427, %v425
    %v568 = vpack.c.b16 %v428, %v426
    %v569 = vpack.c.b16 %v431, %v429
    %v570 = vpack.c.b16 %v432, %v430
    %v571 = vpack.c.b16 %v435, %v433
    %v572 = vpack.c.b16 %v436, %v434
    %v573 = vpack.c.b16 %v439, %v437
    %v574 = vpack.c.b16 %v440, %v438
    %v575 = vpack.c.b16 %v443, %v441
    %v576 = vpack.c.b16 %v444, %v442
    %v577 = vpack.c.b16 %v447, %v445
    %v578 = vpack.c.b16 %v448, %v446
    %v579 = vpack.c.b16 %v451, %v449
    %v580 = vpack.c.b16 %v452, %v450
    %v581 = vpack.c.b16 %v455, %v453
    %v582 = vpack.c.b16 %v456, %v454
    %v583 = vpack.c.b16 %v459, %v457
    %v584 = vpack.c.b16 %v460, %v458
    %v585 = vpack.c.b16 %v463, %v461
    %v586 = vpack.c.b16 %v464, %v462
    %v587 = vpack.c.b16 %v467, %v465
    %v588 = vpack.c.b16 %v468, %v466
    %v589 = vpack.c.b16 %v471, %v469
    %v590 = vpack.c.b16 %v472, %v470
    %v591 = vpack.c.b16 %v475, %v473
    %v592 = vpack.c.b16 %v476, %v474
    %v593 = vpack.c.b16 %v479, %v477
    %v594 = vpack.c.b16 %v480, %v478
    %v595 = vpack.c.b16 %v483, %v481
    %v596 = vpack.c.b16 %v484, %v482
    %v597 = vpack.c.b16 %v487, %v485
    %v598 = vpack.c.b16 %v488, %v486
    %v599 = vpack.c.b16 %v491, %v489
    %v600 = vpack.c.b16 %v492, %v490
    %v601 = vpack.c.b16 %v495, %v493
    %v602 = vpack.c.b16 %v496, %v494
    %v603 = vpack.c.b16 %v499, %v497
    %v604 = vpack.c.b16 %v500, %v498
    %v605 = vpack.c.b16 %v503, %v501
    %v606 = vpack.c.b16 %v504, %v502
    %v607 = vpack.c.b16 %v507, %v505
    %v608 = vpack.c.b16 %v508, %v506
    %v609 = vpack.c.b16 %v511, %v509
    %v610 = vpack.c.b16 %v512, %v510
    %vm709 = vcmask 130048
    %v711 = vsel %vm709, %v212, 0
    %713 = vmatprep.subr.bf16.mxu0 %v528
    %714 = vmatpush1.bf16.msra.mxu0 %v527
    %715 = vmatprep.subr.bf16.mxu0 %v526
    %716 = vmatpush1.bf16.msra.mxu0 %v525
    %717 = vmatprep.subr.bf16.mxu0 %v524
    %718 = vmatpush1.bf16.msra.mxu0 %v523
    %719 = vmatprep.subr.bf16.mxu0 %v522
    %720 = vmatpush1.bf16.msra.mxu0 %v521
    %721 = vmatprep.subr.bf16.mxu0 %v520
    %722 = vmatpush1.bf16.msra.mxu0 %v519
    %723 = vmatprep.subr.bf16.mxu0 %v518
    %724 = vmatpush1.bf16.msra.mxu0 %v517
    %725 = vmatprep.subr.bf16.mxu0 %v516
    %726 = vmatpush1.bf16.msra.mxu0 %v515
    %727 = vmatprep.subr.bf16.mxu0 %v514
    %728 = vmatpush1.bf16.msra.mxu0 %v513
    %729 = vmatprep.subr.bf16.mxu0 %v544
    %730 = vmatpush2.bf16.msra.mxu0 %v543
    %731 = vmatprep.subr.bf16.mxu0 %v542
    %732 = vmatpush2.bf16.msra.mxu0 %v541
    %733 = vmatprep.subr.bf16.mxu0 %v540
    %734 = vmatpush2.bf16.msra.mxu0 %v539
    %735 = vmatprep.subr.bf16.mxu0 %v538
    %736 = vmatpush2.bf16.msra.mxu0 %v537
    %737 = vmatprep.subr.bf16.mxu0 %v536
    %738 = vmatpush2.bf16.msra.mxu0 %v535
    %739 = vmatprep.subr.bf16.mxu0 %v534
    %740 = vmatpush2.bf16.msra.mxu0 %v533
    %741 = vmatprep.subr.bf16.mxu0 %v532
    %742 = vmatpush2.bf16.msra.mxu0 %v531
    %743 = vmatprep.subr.bf16.mxu0 %v530
    %744 = vmatpush2.bf16.msra.mxu0 %v529
    %745 = vmatprep.mubr.bf16.mxu0 %v207
    %746 = vmatmul.mubr.bf16.gmra.mxu0 %v206
    %v747 = vpop.f32.mrf.mxu0
    %v748 = vadd.f32 %v188, %v747
    %v749 = vpop.f32.mrf.mxu0
    %v750 = vadd.f32 %v192, %v749
    %v751 = vpop.f32.mrf.mxu0
    %v752 = vpop.f32.mrf.mxu0
    %753 = vdwg.mxu0
    %754 = vmatprep.subr.bf16.mxu0 %v560
    %755 = vmatpush1.bf16.msra.mxu0 %v559
    %756 = vmatprep.subr.bf16.mxu0 %v558
    %757 = vmatpush1.bf16.msra.mxu0 %v557
    %758 = vmatprep.subr.bf16.mxu0 %v556
    %759 = vmatpush1.bf16.msra.mxu0 %v555
    %760 = vmatprep.subr.bf16.mxu0 %v554
    %761 = vmatpush1.bf16.msra.mxu0 %v553
    %762 = vmatprep.subr.bf16.mxu0 %v552
    %763 = vmatpush1.bf16.msra.mxu0 %v551
    %764 = vmatprep.subr.bf16.mxu0 %v550
    %765 = vmatpush1.bf16.msra.mxu0 %v549
    %766 = vmatprep.subr.bf16.mxu0 %v548
    %767 = vmatpush1.bf16.msra.mxu0 %v547
    %768 = vmatprep.subr.bf16.mxu0 %v546
    %769 = vmatpush1.bf16.msra.mxu0 %v545
    %770 = vmatprep.subr.bf16.mxu0 %v576
    %771 = vmatpush2.bf16.msra.mxu0 %v575
    %772 = vmatprep.subr.bf16.mxu0 %v574
    %773 = vmatpush2.bf16.msra.mxu0 %v573
    %774 = vmatprep.subr.bf16.mxu0 %v572
    %775 = vmatpush2.bf16.msra.mxu0 %v571
    %776 = vmatprep.subr.bf16.mxu0 %v570
    %777 = vmatpush2.bf16.msra.mxu0 %v569
    %778 = vmatprep.subr.bf16.mxu0 %v568
    %779 = vmatpush2.bf16.msra.mxu0 %v567
    %780 = vmatprep.subr.bf16.mxu0 %v566
    %781 = vmatpush2.bf16.msra.mxu0 %v565
    %782 = vmatprep.subr.bf16.mxu0 %v564
    %783 = vmatpush2.bf16.msra.mxu0 %v563
    %784 = vmatprep.subr.bf16.mxu0 %v562
    %785 = vmatpush2.bf16.msra.mxu0 %v561
    %786 = vmatprep.mubr.bf16.mxu0 %v209
    %787 = vmatmul.mubr.bf16.gmra.mxu0 %v208
    %v788 = vpop.f32.mrf.mxu0
    %v789 = vadd.f32 %v748, %v788
    %v790 = vpop.f32.mrf.mxu0
    %v791 = vadd.f32 %v750, %v790
    %v792 = vpop.f32.mrf.mxu0
    %v793 = vpop.f32.mrf.mxu0
    %794 = vdwg.mxu0
    %795 = vmatprep.subr.bf16.mxu0 %v592
    %796 = vmatpush1.bf16.msra.mxu0 %v591
    %797 = vmatprep.subr.bf16.mxu0 %v590
    %798 = vmatpush1.bf16.msra.mxu0 %v589
    %799 = vmatprep.subr.bf16.mxu0 %v588
    %800 = vmatpush1.bf16.msra.mxu0 %v587
    %801 = vmatprep.subr.bf16.mxu0 %v586
    %802 = vmatpush1.bf16.msra.mxu0 %v585
    %803 = vmatprep.subr.bf16.mxu0 %v584
    %804 = vmatpush1.bf16.msra.mxu0 %v583
    %805 = vmatprep.subr.bf16.mxu0 %v582
    %806 = vmatpush1.bf16.msra.mxu0 %v581
    %807 = vmatprep.subr.bf16.mxu0 %v580
    %808 = vmatpush1.bf16.msra.mxu0 %v579
    %809 = vmatprep.subr.bf16.mxu0 %v578
    %810 = vmatpush1.bf16.msra.mxu0 %v577
    %811 = vmatprep.subr.bf16.mxu0 %v608
    %812 = vmatpush2.bf16.msra.mxu0 %v607
    %813 = vmatprep.subr.bf16.mxu0 %v606
    %814 = vmatpush2.bf16.msra.mxu0 %v605
    %815 = vmatprep.subr.bf16.mxu0 %v604
    %816 = vmatpush2.bf16.msra.mxu0 %v603
    %817 = vmatprep.subr.bf16.mxu0 %v602
    %818 = vmatpush2.bf16.msra.mxu0 %v601
    %819 = vmatprep.subr.bf16.mxu0 %v600
    %820 = vmatpush2.bf16.msra.mxu0 %v599
    %821 = vmatprep.subr.bf16.mxu0 %v598
    %822 = vmatpush2.bf16.msra.mxu0 %v597
    %823 = vmatprep.subr.bf16.mxu0 %v596
    %824 = vmatpush2.bf16.msra.mxu0 %v595
    %825 = vmatprep.subr.bf16.mxu0 %v594
    %826 = vmatpush2.bf16.msra.mxu0 %v593
    %827 = vmatprep.mubr.bf16.mxu0 %v211
    %828 = vmatmul.mubr.bf16.gmra.mxu0 %v210
    %v829 = vpop.f32.mrf.mxu0
    %v830 = vadd.f32 %v789, %v829
    %v831 = vpop.f32.mrf.mxu0
    %v832 = vadd.f32 %v791, %v831
    %v833 = vpop.f32.mrf.mxu0
    %v834 = vpop.f32.mrf.mxu0
    %835 = vdwg.mxu0
    %836 = vmatprep.subr.bf16.mxu0 0
    %837 = vmatpush1.bf16.msra.mxu0 0
    %838 = vmatprep.subr.bf16.mxu0 0
    %839 = vmatpush1.bf16.msra.mxu0 0
    %840 = vmatprep.subr.bf16.mxu0 0
    %841 = vmatpush1.bf16.msra.mxu0 0
    %842 = vmatprep.subr.bf16.mxu0 0
    %843 = vmatpush1.bf16.msra.mxu0 0
    %844 = vmatprep.subr.bf16.mxu0 0
    %845 = vmatpush1.bf16.msra.mxu0 0
    %846 = vmatprep.subr.bf16.mxu0 0
    %847 = vmatpush1.bf16.msra.mxu0 0
    %848 = vmatprep.subr.bf16.mxu0 0
    %849 = vmatpush1.bf16.msra.mxu0 0
    %850 = vmatprep.subr.bf16.mxu0 %v610
    %851 = vmatpush1.bf16.msra.mxu0 %v609
    %852 = vmatprep.subr.bf16.mxu0 0
    %853 = vmatpush2.bf16.msra.mxu0 0
    %854 = vmatprep.subr.bf16.mxu0 0
    %855 = vmatpush2.bf16.msra.mxu0 0
    %856 = vmatprep.subr.bf16.mxu0 0
    %857 = vmatpush2.bf16.msra.mxu0 0
    %858 = vmatprep.subr.bf16.mxu0 0
    %859 = vmatpush2.bf16.msra.mxu0 0
    %860 = vmatprep.subr.bf16.mxu0 0
    %861 = vmatpush2.bf16.msra.mxu0 0
    %862 = vmatprep.subr.bf16.mxu0 0
    %863 = vmatpush2.bf16.msra.mxu0 0
    %864 = vmatprep.subr.bf16.mxu0 0
    %865 = vmatpush2.bf16.msra.mxu0 0
    %866 = vmatprep.subr.bf16.mxu0 0
    %867 = vmatpush2.bf16.msra.mxu0 0
    %868 = vmatprep.mubr.bf16.mxu0 0
    %869 = vmatmul.mubr.bf16.gmra.mxu0 %v711
    %v870 = vpop.f32.mrf.mxu0
    %v871 = vadd.f32 %v830, %v870
    %v872 = vpop.f32.mrf.mxu0
    %v873 = vadd.f32 %v832, %v872
    %v874 = vpop.f32.mrf.mxu0
    %v875 = vpop.f32.mrf.mxu0
    %876 = vdwg.mxu0
    %v877 = vmax.f32 %v871, 0.0
    %v878 = vmax.f32 %v873, 0.0
    %v879 = vpack.c.bf16 %v877, %v877
    %v880 = vpack.c.bf16 %v878, %v878
    %v881 = vld [vmem:[#allocation7] sm:$0xf]
    %v882 = vld [vmem:[#allocation7 + $0x4] sm:$0xf]
    %v883 = vld [vmem:[#allocation7 + $0x8] sm:$0xf]
    %v884 = vld [vmem:[#allocation7 + $0xc] sm:$0xf]
    %v885 = vld [vmem:[#allocation7 + $0x10] sm:$0xf]
    %v886 = vld [vmem:[#allocation7 + $0x14] sm:$0xf]
    %v887 = vld [vmem:[#allocation7 + $0x18] sm:$0xf]
    %v888 = vld [vmem:[#allocation7 + $0x1c] sm:$0xf]
    %v889 = vld [vmem:[#allocation7 + $0x20] sm:$0xf]
    %v890 = vld [vmem:[#allocation7 + $0x24] sm:$0xf]
    %v891 = vld [vmem:[#allocation7 + $0x28] sm:$0xf]
    %v892 = vld [vmem:[#allocation7 + $0x2c] sm:$0xf]
    %v893 = vld [vmem:[#allocation7 + $0x30] sm:$0xf]
    %v894 = vld [vmem:[#allocation7 + $0x34] sm:$0xf]
    %v895 = vld [vmem:[#allocation7 + $0x38] sm:$0xf]
    %v896 = vld [vmem:[#allocation7 + $0x3c] sm:$0xf]
    %v897 = vld [vmem:[#allocation7 + $0x40] sm:$0xf]
    %v898 = vld [vmem:[#allocation7 + $0x44] sm:$0xf]
    %v899 = vld [vmem:[#allocation7 + $0x48] sm:$0xf]
    %v900 = vld [vmem:[#allocation7 + $0x4c] sm:$0xf]
    %v901 = vld [vmem:[#allocation7 + $0x50] sm:$0xf]
    %v902 = vld [vmem:[#allocation7 + $0x54] sm:$0xf]
    %v903 = vld [vmem:[#allocation7 + $0x58] sm:$0xf]
    %v904 = vld [vmem:[#allocation7 + $0x5c] sm:$0xf]
    %v905 = vld [vmem:[#allocation7 + $0x60] sm:$0xf]
    %v906 = vld [vmem:[#allocation7 + $0x64] sm:$0xf]
    %v907 = vld [vmem:[#allocation7 + $0x68] sm:$0xf]
    %v908 = vld [vmem:[#allocation7 + $0x6c] sm:$0xf]
    %v909 = vld [vmem:[#allocation7 + $0x70] sm:$0xf]
    %v910 = vld [vmem:[#allocation7 + $0x74] sm:$0xf]
    %v911 = vld [vmem:[#allocation7 + $0x78] sm:$0xf]
    %v912 = vld [vmem:[#allocation7 + $0x7c] sm:$0xf]
    %v913 = vld [vmem:[%s4] sm:$0x1]
    %v915 = vlaneseq
    %v916 = vshrl.u32 %v915, 7
    %v917 = vsub.s32 0, %v916
    %v918 = vrot.slane %v913, %v917
    %v952 = vunpack.c.l.b16 %v881
    %v953 = vunpack.c.l.b16 %v882
    %v954 = vunpack.c.l.b16 %v883
    %v955 = vunpack.c.l.b16 %v884
    %v956 = vunpack.c.l.b16 %v885
    %v957 = vunpack.c.l.b16 %v886
    %v958 = vunpack.c.l.b16 %v887
    %v959 = vunpack.c.l.b16 %v888
    %v960 = vunpack.c.l.b16 %v889
    %v961 = vunpack.c.l.b16 %v890
    %v962 = vunpack.c.l.b16 %v891
    %v963 = vunpack.c.l.b16 %v892
    %v964 = vunpack.c.l.b16 %v893
    %v965 = vunpack.c.l.b16 %v894
    %v966 = vunpack.c.l.b16 %v895
    %v967 = vunpack.c.l.b16 %v896
    %v968 = vunpack.c.l.b16 %v897
    %v969 = vunpack.c.l.b16 %v898
    %v970 = vunpack.c.l.b16 %v899
    %v971 = vunpack.c.l.b16 %v900
    %v972 = vunpack.c.l.b16 %v901
    %v973 = vunpack.c.l.b16 %v902
    %v974 = vunpack.c.l.b16 %v903
    %v975 = vunpack.c.l.b16 %v904
    %v976 = vunpack.c.l.b16 %v905
    %v977 = vunpack.c.l.b16 %v906
    %v978 = vunpack.c.l.b16 %v907
    %v979 = vunpack.c.l.b16 %v908
    %v980 = vunpack.c.l.b16 %v909
    %v981 = vunpack.c.l.b16 %v910
    %v982 = vunpack.c.l.b16 %v911
    %v983 = vunpack.c.l.b16 %v912
    %v984 = vpack.c.b16 %v953, %v952
    %v985 = vpack.c.b16 %v955, %v954
    %v986 = vpack.c.b16 %v957, %v956
    %v987 = vpack.c.b16 %v959, %v958
    %v988 = vpack.c.b16 %v961, %v960
    %v989 = vpack.c.b16 %v963, %v962
    %v990 = vpack.c.b16 %v965, %v964
    %v991 = vpack.c.b16 %v967, %v966
    %v992 = vpack.c.b16 %v969, %v968
    %v993 = vpack.c.b16 %v971, %v970
    %v994 = vpack.c.b16 %v973, %v972
    %v995 = vpack.c.b16 %v975, %v974
    %v996 = vpack.c.b16 %v977, %v976
    %v997 = vpack.c.b16 %v979, %v978
    %v998 = vpack.c.b16 %v981, %v980
    %v999 = vpack.c.b16 %v983, %v982
    %1016 = vmatprep.subr.bf16.mxu0 0
    %1017 = vmatpush1.bf16.msra.mxu0 %v991
    %1018 = vmatprep.subr.bf16.mxu0 0
    %1019 = vmatpush1.bf16.msra.mxu0 %v990
    %1020 = vmatprep.subr.bf16.mxu0 0
    %1021 = vmatpush1.bf16.msra.mxu0 %v989
    %1022 = vmatprep.subr.bf16.mxu0 0
    %1023 = vmatpush1.bf16.msra.mxu0 %v988
    %1024 = vmatprep.subr.bf16.mxu0 0
    %1025 = vmatpush1.bf16.msra.mxu0 %v987
    %1026 = vmatprep.subr.bf16.mxu0 0
    %1027 = vmatpush1.bf16.msra.mxu0 %v986
    %1028 = vmatprep.subr.bf16.mxu0 0
    %1029 = vmatpush1.bf16.msra.mxu0 %v985
    %1030 = vmatprep.subr.bf16.mxu0 0
    %1031 = vmatpush1.bf16.msra.mxu0 %v984
    %1032 = vmatprep.subr.bf16.mxu0 0
    %1033 = vmatpush2.bf16.msra.mxu0 %v999
    %1034 = vmatprep.subr.bf16.mxu0 0
    %1035 = vmatpush2.bf16.msra.mxu0 %v998
    %1036 = vmatprep.subr.bf16.mxu0 0
    %1037 = vmatpush2.bf16.msra.mxu0 %v997
    %1038 = vmatprep.subr.bf16.mxu0 0
    %1039 = vmatpush2.bf16.msra.mxu0 %v996
    %1040 = vmatprep.subr.bf16.mxu0 0
    %1041 = vmatpush2.bf16.msra.mxu0 %v995
    %1042 = vmatprep.subr.bf16.mxu0 0
    %1043 = vmatpush2.bf16.msra.mxu0 %v994
    %1044 = vmatprep.subr.bf16.mxu0 0
    %1045 = vmatpush2.bf16.msra.mxu0 %v993
    %1046 = vmatprep.subr.bf16.mxu0 0
    %1047 = vmatpush2.bf16.msra.mxu0 %v992
    %1048 = vmatprep.mubr.bf16.mxu0 %v880
    %1049 = vmatmul.mubr.bf16.gmra.mxu0 %v879
    %v1050 = vpop.f32.mrf.mxu0
    %v1051 = vadd.f32 %v918, %v1050
    %v1052 = vpop.f32.mrf.mxu0
    %v1053 = vpop.f32.mrf.mxu0
    %v1054 = vpop.f32.mrf.mxu0
    %1055 = vdwg.mxu0
    %v1056 = vmax.f32 %v1051, 0.0
    %v1057 = vpack.c.bf16 %v1056, %v1056
    %v1058 = vld [vmem:[#allocation8] sm:$0xf]
    %v1059 = vld [vmem:[#allocation8 + $0x4] sm:$0xf]
    %v1060 = vld [vmem:[#allocation8 + $0x8] sm:$0xf]
    %v1061 = vld [vmem:[#allocation8 + $0xc] sm:$0xf]
    %v1062 = vld [vmem:[#allocation8 + $0x10] sm:$0xf]
    %v1063 = vld [vmem:[#allocation8 + $0x14] sm:$0xf]
    %v1064 = vld [vmem:[#allocation8 + $0x18] sm:$0xf]
    %v1065 = vld [vmem:[#allocation8 + $0x1c] sm:$0xf]
    %v1066 = vld [vmem:[#allocation8 + $0x20] sm:$0xf]
    %v1067 = vld [vmem:[#allocation8 + $0x24] sm:$0xf]
    %v1068 = vld [vmem:[#allocation8 + $0x28] sm:$0xf]
    %v1069 = vld [vmem:[#allocation8 + $0x2c] sm:$0xf]
    %v1070 = vld [vmem:[#allocation8 + $0x30] sm:$0xf]
    %v1071 = vld [vmem:[#allocation8 + $0x34] sm:$0xf]
    %v1072 = vld [vmem:[#allocation8 + $0x38] sm:$0xf]
    %v1073 = vld [vmem:[#allocation8 + $0x3c] sm:$0xf]
    %v1074 = vld [vmem:[%s6] sm:$0x1]
    %v1076 = vlaneseq
    %v1077 = vshrl.u32 %v1076, 7
    %v1078 = vsub.s32 0, %v1077
    %v1079 = vrot.slane %v1074, %v1078
    %v1097 = vunpack.c.l.b16 %v1058
    %v1098 = vunpack.c.l.b16 %v1059
    %v1099 = vunpack.c.l.b16 %v1060
    %v1100 = vunpack.c.l.b16 %v1061
    %v1101 = vunpack.c.l.b16 %v1062
    %v1102 = vunpack.c.l.b16 %v1063
    %v1103 = vunpack.c.l.b16 %v1064
    %v1104 = vunpack.c.l.b16 %v1065
    %v1105 = vunpack.c.l.b16 %v1066
    %v1106 = vunpack.c.l.b16 %v1067
    %v1107 = vunpack.c.l.b16 %v1068
    %v1108 = vunpack.c.l.b16 %v1069
    %v1109 = vunpack.c.l.b16 %v1070
    %v1110 = vunpack.c.l.b16 %v1071
    %v1111 = vunpack.c.l.b16 %v1072
    %v1112 = vunpack.c.l.b16 %v1073
    %v1113 = vpack.c.b16 %v1098, %v1097
    %v1114 = vpack.c.b16 %v1100, %v1099
    %v1115 = vpack.c.b16 %v1102, %v1101
    %v1116 = vpack.c.b16 %v1104, %v1103
    %v1117 = vpack.c.b16 %v1106, %v1105
    %v1118 = vpack.c.b16 %v1108, %v1107
    %v1119 = vpack.c.b16 %v1110, %v1109
    %v1120 = vpack.c.b16 %v1112, %v1111
    %1129 = vmatprep.subr.bf16.mxu0 0
    %1130 = vmatpush1.bf16.msra.mxu0 %v1120
    %1131 = vmatprep.subr.bf16.mxu0 0
    %1132 = vmatpush1.bf16.msra.mxu0 %v1119
    %1133 = vmatprep.subr.bf16.mxu0 0
    %1134 = vmatpush1.bf16.msra.mxu0 %v1118
    %1135 = vmatprep.subr.bf16.mxu0 0
    %1136 = vmatpush1.bf16.msra.mxu0 %v1117
    %1137 = vmatprep.subr.bf16.mxu0 0
    %1138 = vmatpush1.bf16.msra.mxu0 %v1116
    %1139 = vmatprep.subr.bf16.mxu0 0
    %1140 = vmatpush1.bf16.msra.mxu0 %v1115
    %1141 = vmatprep.subr.bf16.mxu0 0
    %1142 = vmatpush1.bf16.msra.mxu0 %v1114
    %1143 = vmatprep.subr.bf16.mxu0 0
    %1144 = vmatpush1.bf16.msra.mxu0 %v1113
    %1145 = vmatprep.subr.bf16.mxu0 0
    %1146 = vmatpush2.bf16.msra.mxu0 0
    %1147 = vmatprep.subr.bf16.mxu0 0
    %1148 = vmatpush2.bf16.msra.mxu0 0
    %1149 = vmatprep.subr.bf16.mxu0 0
    %1150 = vmatpush2.bf16.msra.mxu0 0
    %1151 = vmatprep.subr.bf16.mxu0 0
    %1152 = vmatpush2.bf16.msra.mxu0 0
    %1153 = vmatprep.subr.bf16.mxu0 0
    %1154 = vmatpush2.bf16.msra.mxu0 0
    %1155 = vmatprep.subr.bf16.mxu0 0
    %1156 = vmatpush2.bf16.msra.mxu0 0
    %1157 = vmatprep.subr.bf16.mxu0 0
    %1158 = vmatpush2.bf16.msra.mxu0 0
    %1159 = vmatprep.subr.bf16.mxu0 0
    %1160 = vmatpush2.bf16.msra.mxu0 0
    %1161 = vmatprep.mubr.bf16.mxu0 0
    %1162 = vmatmul.mubr.bf16.gmra.mxu0 %v1057
    %v1163 = vpop.f32.mrf.mxu0
    %v1164 = vadd.f32 %v1079, %v1163
    %v1165 = vpop.f32.mrf.mxu0
    %v1166 = vpop.f32.mrf.mxu0
    %v1167 = vpop.f32.mrf.mxu0
    %1168 = vdwg.mxu0
    %1169 = vst [vmem:[#allocation10] sm:$0xff] %v1164
    // Predicated region
    $region46: #{tpu_custom_call.1} parent=1 // pred_check
      _
    $region47: #{tpu_custom_call.1} parent=1 // pred_check_branch
      %1171 = sbr.rel (0) target = $region49
    $region48: #{tpu_custom_call.1} parent=1 // pred_region
      %s1173 = ssub.s32 128, 128
      %1174 = vsyncadd [#allocation4], %s1173
      %s1176 = sshll.u32 [#allocation10], 4
      %s1177 = int_to_ptr.vmem [resolvable:$true] %s1176
      %1179 = dma.vmem_to_hbm [thread:$0]  %s1177, 128, %s7, [#allocation4]
    $region49: #{tpu_custom_call.1} parent=1 // pred_fallthru
      _
    // Predicated region
    $region50: #{tpu_custom_call.1} parent=1 // pred_check
      _
    $region51: #{tpu_custom_call.1} parent=1 // pred_check_branch
      %1181 = sbr.rel (0) target = $region53
    $region52: #{tpu_custom_call.1} parent=1 // pred_region
      %1182 = dma.done [#allocation4], 128
    $region53: #{tpu_custom_call.1} parent=1 // pred_fallthru
      _
    %1183 = vsyncpa [#allocation3], 1
    %1184 = vsyncpa [#allocation6], 1
    %1185 = vsyncpa [#allocation9], 1
    %1186 = vsyncpa [#allocation4], 1

</llo_original>
